<compile_context>
chip_gen: v7x
topology: tpu7x:2x2x1
jax: 0.10.0
libtpu: 0.0.40
codegen_flags: <defaults>
</compile_context>

<pallas_src>
import numpy as np
import jax
import jax.numpy as jnp
from jax import lax
from jax.experimental import pallas as pl
from jax.experimental.pallas import tpu as pltpu


# ----------------------------- module "init" ----------------------------------
def make_kernel(k):
    """Mirror of the PyTorch make_kernel: 1-D -> separable outer product,
    normalized to sum to 1.  Returns numpy float32."""
    k = np.asarray(k, dtype=np.float32)
    if k.ndim == 1:
        k = k[None, :] * k[:, None]
    k = k / k.sum()
    return k


# ------------------------------ tile sizing ------------------------------------
def _choose_tiles(NC, H, W, Hp, Wp, Ho, Wo, itemsize):
    """Pick (TB, CB, n_chunks):
      TB = images (fused N*C) per grid step  -> amortizes per-step overhead,
           keeps DMAs large (biggest lever for real StyleGAN2 shapes);
      CB = images per in-register compute chunk -> bounds vreg pressure;
      TB = CB * n_chunks and TB <= NC.
    Budgets keep double-buffered blocks around a few MiB: well inside the
    32 MiB default scoped VMEM and v7x's 64 MiB physical VMEM."""
    per_img_regs = (Hp * Wp + Hp * Wo + Ho * Wo) * 4          # f32 live values
    CB = int(max(1, min(NC, (128 * 1024) // max(per_img_regs, 1))))
    per_img_io = (H * W + Ho * Wo) * itemsize                 # HBM block bytes
    budget_imgs = int(max(CB, (4 * 1024 * 1024) // max(per_img_io, 1)))
    n_chunks = int(max(1, min(NC // CB, budget_imgs // CB)))
    TB = CB * n_chunks
    return TB, CB, n_chunks


# ------------------------------ Pallas kernel ----------------------------------
def blur_pallas(x, taps, pad):
    """x: (N, C, H, W). taps: ('sep', kv_taps, kw_taps) or ('full', k2d_flipped)
    with pre-flipped Python-float taps. pad: (pad0, pad1)."""
    N, C, H, W = x.shape
    pad0, pad1 = int(pad[0]), int(pad[1])

    if taps[0] == "sep":
        kv_taps, kw_taps = taps[1], taps[2]
        kh, kw = len(kv_taps), len(kw_taps)
    else:
        k2d_taps = taps[1]
        kh, kw = len(k2d_taps), len(k2d_taps[0])

    # upfirdn2d (up=down=1): zero-pad by (pad0, pad1) on both spatial axes
    # (negative pad => crop), then correlate with the flipped kernel.
    p0, p1 = max(pad0, 0), max(pad1, 0)           # zero-padding amounts
    lo, hi = max(-pad0, 0), max(-pad1, 0)         # crop amounts
    Hv, Wv = H - lo - hi, W - lo - hi             # surviving input extent
    Hp, Wp = Hv + p0 + p1, Wv + p0 + p1           # padded extent
    Ho, Wo = Hp - kh + 1, Wp - kw + 1             # output extent
    assert Hv > 0 and Wv > 0 and Ho > 0 and Wo > 0

    NC = N * C
    xs = x.reshape(NC, H, W)                      # free reshape; W on lanes
    TB, CB, n_chunks = _choose_tiles(NC, H, W, Hp, Wp, Ho, Wo, x.dtype.itemsize)

    need_pad = (p0 > 0) or (p1 > 0)

    def kern(x_ref, o_ref, *scratch):
        xpad_ref = scratch[0] if need_pad else None

        # Keep the zero border of the padded VMEM scratch up to date.  Only the
        # thin border strips are written (the interior is fully overwritten per
        # chunk below).  Done unconditionally each grid step so it stays correct
        # under megacore "parallel" execution (scratch is per-core).
        if need_pad:
            if p0 > 0:
                xpad_ref[:, pl.ds(0, p0), :] = jnp.zeros((CB, p0, Wp), jnp.float32)
                xpad_ref[:, :, pl.ds(0, p0)] = jnp.zeros((CB, Hp, p0), jnp.float32)
            if p1 > 0:
                xpad_ref[:, pl.ds(p0 + Hv, p1), :] = jnp.zeros((CB, p1, Wp), jnp.float32)
                xpad_ref[:, :, pl.ds(p0 + Wv, p1)] = jnp.zeros((CB, Hp, p1), jnp.float32)

        def chunk(c, carry):
            b0 = pl.multiple_of(c * CB, CB)

            if not need_pad:
                # pure crop / no pad: no staging needed
                xp = x_ref[pl.ds(b0, CB), pl.ds(lo, Hv), pl.ds(lo, Wv)].astype(
                    jnp.float32)
            else:
                # In-kernel padding: copy the valid (possibly cropped) region
                # into the interior of the zero-bordered scratch.  The padded
                # tensor never touches HBM.
                xpad_ref[:, pl.ds(p0, Hv), pl.ds(p0, Wv)] = (
                    x_ref[pl.ds(b0, CB), pl.ds(lo, Hv), pl.ds(lo, Wv)]
                    .astype(jnp.float32))
                xp = xpad_ref[...]                # (CB, Hp, Wp) f32

            if taps[0] == "sep":
                # Separable FIR: horizontal pass (kw taps), then vertical
                # pass (kh taps).  Taps are immediate constants; Python loops
                # unroll at trace time.
                hps = None
                for j in range(kw):
                    term = float(kw_taps[j]) * xp[:, :, j:j + Wo]
                    hps = term if hps is None else hps + term
                acc = None
                for i in range(kh):
                    term = float(kv_taps[i]) * hps[:, i:i + Ho, :]
                    acc = term if acc is None else acc + term
            else:
                # General (non-separable) 2-D kernel fallback: kh*kw taps.
                acc = None
                for i in range(kh):
                    row = xp[:, i:i + Ho, :]
                    for j in range(kw):
                        term = float(k2d_taps[i][j]) * row[:, :, j:j + Wo]
                        acc = term if acc is None else acc + term

            o_ref[pl.ds(b0, CB), :, :] = acc.astype(o_ref.dtype)
            return carry

        lax.fori_loop(0, n_chunks, chunk, 0, unroll=n_chunks <= 4)

    scratch_shapes = [pltpu.VMEM((CB, Hp, Wp), jnp.float32)] if need_pad else []

    # Explicit VMEM budget: double-buffered in/out blocks + padded scratch + slack.
    needed = (2 * TB * (H * W + Ho * Wo) * x.dtype.itemsize
              + (CB * Hp * Wp * 4 if need_pad else 0)
              + (2 << 20))
    vmem_limit = int(min(max(needed, 32 << 20), 56 << 20))
    # TODO(synk): for spatial extents where a single image's in+out blocks exceed
    # ~56 MiB (>= ~2048x2048 f32), add H-tiling with a (kh-1)-row halo.

    out = pl.pallas_call(
        kern,
        out_shape=jax.ShapeDtypeStruct((NC, Ho, Wo), x.dtype),
        grid=(pl.cdiv(NC, TB),),
        in_specs=[pl.BlockSpec((TB, H, W), lambda g: (g, 0, 0))],
        out_specs=pl.BlockSpec((TB, Ho, Wo), lambda g: (g, 0, 0)),
        scratch_shapes=scratch_shapes,
        compiler_params=pltpu.CompilerParams(
            dimension_semantics=("parallel",),
            vmem_limit_bytes=vmem_limit),
    )(xs)

    return out.reshape(N, C, Ho, Wo)


# ------------------------------- module wrapper --------------------------------
class Blur:
    """Forward-equivalent to the PyTorch Blur module (upfirdn2d, up=down=1)."""

    def __init__(self, kernel, pad, upsample_factor=1):
        k_in = np.asarray(kernel, dtype=np.float32)
        k2d = make_kernel(k_in)
        if upsample_factor > 1:
            k2d = k2d * (upsample_factor ** 2)
        self.kernel = jnp.asarray(k2d)            # mirrors the registered buffer
        self.pad = (int(pad[0]), int(pad[1]))

        # Pre-flip the taps (upfirdn2d convolves with the flipped kernel) and
        # bake them as Python constants for the Pallas kernel.
        if k_in.ndim == 1:
            # separable: k2d = s * outer(k1, k1), k1 = k / k.sum()
            k1f = (k_in.astype(np.float64) / float(k_in.sum()))[::-1]
            s = float(upsample_factor) ** 2 if upsample_factor > 1 else 1.0
            self._taps = ("sep",
                          tuple(float(v) * s for v in k1f),   # vertical taps
                          tuple(float(v) for v in k1f))       # horizontal taps
        else:
            kf = np.asarray(k2d)[::-1, ::-1]
            self._taps = ("full",
                          tuple(tuple(float(v) for v in row) for row in kf))

    def __call__(self, x):
        return blur_pallas(x, self._taps, self.pad)


# ------------------------------- reference -------------------------------------
def blur_ref(x, kernel2d, pad):
    N, C, H, W = x.shape
    pad0, pad1 = pad
    kh, kw = kernel2d.shape
    xp = jnp.pad(x, ((0, 0), (0, 0), (max(pad0, 0), max(pad1, 0)),
                     (max(pad0, 0), max(pad1, 0))))
    xp = xp[:, :, max(-pad0, 0):xp.shape[2] - max(-pad1, 0),
            max(-pad0, 0):xp.shape[3] - max(-pad1, 0)]
    Hp, Wp = xp.shape[2], xp.shape[3]
    Ho, Wo = Hp - kh + 1, Wp - kw + 1
    kflip = kernel2d[::-1, ::-1]
    acc = jnp.zeros((N, C, Ho, Wo), jnp.float32)
    for i in range(kh):
        for j in range(kw):
            acc = acc + kflip[i, j] * xp[:, :, i:i + Ho, j:j + Wo]
    return acc.astype(x.dtype)


if __name__ == "__main__":
    key = jax.random.PRNGKey(0)
    x = jax.random.normal(key, (2, 4, 16, 16), dtype=jnp.float32)

    # 1) Typical StyleGAN2 blur: 1D kernel [1,3,3,1], pad=(2,1) -> same-size out.
    blur = Blur(kernel=[1.0, 3.0, 3.0, 1.0], pad=(2, 1), upsample_factor=1)
    out = jax.block_until_ready(blur(x))
    ref = blur_ref(x, blur.kernel, blur.pad)
    assert out.shape == ref.shape == (2, 4, 16, 16)
    assert jnp.allclose(out, ref, atol=1e-5, rtol=1e-5)

    # 2) No-pad path (no VMEM scratch): kernel [1,2,1], pad=(0,0).
    blur0 = Blur(kernel=[1.0, 2.0, 1.0], pad=(0, 0), upsample_factor=1)
    out0 = jax.block_until_ready(blur0(x))
    ref0 = blur_ref(x, blur0.kernel, blur0.pad)
    assert out0.shape == ref0.shape
    assert jnp.allclose(out0, ref0, atol=1e-5, rtol=1e-5)

    # 3) Upsample-scaled blur with symmetric pad (as used after upsampling).
    blur2 = Blur(kernel=[1.0, 3.0, 3.0, 1.0], pad=(2, 2), upsample_factor=2)
    out2 = jax.block_until_ready(blur2(x))
    ref2 = blur_ref(x, blur2.kernel, blur2.pad)
    assert out2.shape == ref2.shape
    assert jnp.allclose(out2, ref2, atol=1e-5, rtol=1e-5)

    print("KERNEL_OK")
</pallas_src>

<mosaic_0001>
module attributes {stable_mosaic.version = 11 : i64} {
  func.func @kern(%arg0: i32, %arg1: memref<8x16x16xf32, #tpu.memory_space<vmem>>, %arg2: memref<8x16x16xf32, #tpu.memory_space<vmem>>, %arg3: memref<8x19x19xf32, #tpu.memory_space<vmem>>) attributes {dimension_semantics = [#tpu.dimension_semantics<parallel>], iteration_bounds = array<i64: 1>, scalar_prefetch = 0 : i64, scratch_operands = 1 : i64, tpu.core_type = #tpu.core_type<tc>, window_params = [{transform_indices = @transform_0, window_bounds = array<i64: 8, 16, 16>}, {transform_indices = @transform_1, window_bounds = array<i64: 8, 16, 16>}]} {
    %cst = arith.constant 0.000000e+00 : f32
    %0 = vector.broadcast %cst : f32 to vector<8x2x19xf32>
    %c0 = arith.constant 0 : index
    %c0_0 = arith.constant 0 : index
    %c0_1 = arith.constant 0 : index
    %1 = vector.load %arg3[%c0, %c0_0, %c0_1] : memref<8x19x19xf32, #tpu.memory_space<vmem>>, vector<8x2x19xf32>
    tpu.vector_store %arg3[%c0, %c0_0, %c0_1], %0 {strides = array<i32>} : memref<8x19x19xf32, #tpu.memory_space<vmem>>, vector<8x2x19xf32>,
    %cst_2 = arith.constant 0.000000e+00 : f32
    %2 = vector.broadcast %cst_2 : f32 to vector<8x19x2xf32>
    %c0_3 = arith.constant 0 : index
    %c0_4 = arith.constant 0 : index
    %c0_5 = arith.constant 0 : index
    %3 = vector.load %arg3[%c0_3, %c0_4, %c0_5] : memref<8x19x19xf32, #tpu.memory_space<vmem>>, vector<8x19x2xf32>
    tpu.vector_store %arg3[%c0_3, %c0_4, %c0_5], %2 {strides = array<i32>} : memref<8x19x19xf32, #tpu.memory_space<vmem>>, vector<8x19x2xf32>,
    %cst_6 = arith.constant 0.000000e+00 : f32
    %4 = vector.broadcast %cst_6 : f32 to vector<8x1x19xf32>
    %c0_7 = arith.constant 0 : index
    %c18 = arith.constant 18 : index
    %c0_8 = arith.constant 0 : index
    %5 = vector.load %arg3[%c0_7, %c18, %c0_8] : memref<8x19x19xf32, #tpu.memory_space<vmem>>, vector<8x1x19xf32>
    tpu.vector_store %arg3[%c0_7, %c18, %c0_8], %4 {strides = array<i32>} : memref<8x19x19xf32, #tpu.memory_space<vmem>>, vector<8x1x19xf32>,
    %cst_9 = arith.constant 0.000000e+00 : f32
    %6 = vector.broadcast %cst_9 : f32 to vector<8x19x1xf32>
    %c0_10 = arith.constant 0 : index
    %c0_11 = arith.constant 0 : index
    %c18_12 = arith.constant 18 : index
    %7 = vector.load %arg3[%c0_10, %c0_11, %c18_12] : memref<8x19x19xf32, #tpu.memory_space<vmem>>, vector<8x19x1xf32>
    tpu.vector_store %arg3[%c0_10, %c0_11, %c18_12], %6 {strides = array<i32>} : memref<8x19x19xf32, #tpu.memory_space<vmem>>, vector<8x19x1xf32>,
    %c0_i32 = arith.constant 0 : i32
    %c8_i32 = arith.constant 8 : i32
    %8 = arith.muli %c0_i32, %c8_i32 : i32
    %9 = tpu.assume_multiple %8, 8 : i32
    %10 = arith.index_cast %9 : i32 to index
    %c0_13 = arith.constant 0 : index
    %c0_14 = arith.constant 0 : index
    %11 = vector.load %arg1[%10, %c0_13, %c0_14] : memref<8x16x16xf32, #tpu.memory_space<vmem>>, vector<8x16x16xf32>
    %c0_15 = arith.constant 0 : index
    %c2 = arith.constant 2 : index
    %c2_16 = arith.constant 2 : index
    %12 = vector.load %arg3[%c0_15, %c2, %c2_16] : memref<8x19x19xf32, #tpu.memory_space<vmem>>, vector<8x16x16xf32>
    tpu.vector_store %arg3[%c0_15, %c2, %c2_16], %11 {strides = array<i32>} : memref<8x19x19xf32, #tpu.memory_space<vmem>>, vector<8x16x16xf32>,
    %c0_17 = arith.constant 0 : index
    %c0_18 = arith.constant 0 : index
    %c0_19 = arith.constant 0 : index
    %13 = vector.load %arg3[%c0_17, %c0_18, %c0_19] : memref<8x19x19xf32, #tpu.memory_space<vmem>>, vector<8x19x19xf32>
    %14 = vector.extract_strided_slice %13 {offsets = [0, 0, 0], sizes = [8, 19, 16], strides = [1, 1, 1]} : vector<8x19x19xf32> to vector<8x19x16xf32>
    %cst_20 = arith.constant 1.250000e-01 : f32
    %15 = vector.broadcast %cst_20 : f32 to vector<8x19x16xf32>
    %16 = arith.mulf %15, %14 : vector<8x19x16xf32>
    %17 = vector.extract_strided_slice %13 {offsets = [0, 0, 1], sizes = [8, 19, 16], strides = [1, 1, 1]} : vector<8x19x19xf32> to vector<8x19x16xf32>
    %cst_21 = arith.constant 3.750000e-01 : f32
    %18 = vector.broadcast %cst_21 : f32 to vector<8x19x16xf32>
    %19 = arith.mulf %18, %17 : vector<8x19x16xf32>
    %20 = arith.addf %16, %19 : vector<8x19x16xf32>
    %21 = vector.extract_strided_slice %13 {offsets = [0, 0, 2], sizes = [8, 19, 16], strides = [1, 1, 1]} : vector<8x19x19xf32> to vector<8x19x16xf32>
    %cst_22 = arith.constant 3.750000e-01 : f32
    %22 = vector.broadcast %cst_22 : f32 to vector<8x19x16xf32>
    %23 = arith.mulf %22, %21 : vector<8x19x16xf32>
    %24 = arith.addf %20, %23 : vector<8x19x16xf32>
    %25 = vector.extract_strided_slice %13 {offsets = [0, 0, 3], sizes = [8, 19, 16], strides = [1, 1, 1]} : vector<8x19x19xf32> to vector<8x19x16xf32>
    %cst_23 = arith.constant 1.250000e-01 : f32
    %26 = vector.broadcast %cst_23 : f32 to vector<8x19x16xf32>
    %27 = arith.mulf %26, %25 : vector<8x19x16xf32>
    %28 = arith.addf %24, %27 : vector<8x19x16xf32>
    %29 = vector.extract_strided_slice %28 {offsets = [0, 0, 0], sizes = [8, 16, 16], strides = [1, 1, 1]} : vector<8x19x16xf32> to vector<8x16x16xf32>
    %cst_24 = arith.constant 1.250000e-01 : f32
    %30 = vector.broadcast %cst_24 : f32 to vector<8x16x16xf32>
    %31 = arith.mulf %30, %29 : vector<8x16x16xf32>
    %32 = vector.extract_strided_slice %28 {offsets = [0, 1, 0], sizes = [8, 16, 16], strides = [1, 1, 1]} : vector<8x19x16xf32> to vector<8x16x16xf32>
    %cst_25 = arith.constant 3.750000e-01 : f32
    %33 = vector.broadcast %cst_25 : f32 to vector<8x16x16xf32>
    %34 = arith.mulf %33, %32 : vector<8x16x16xf32>
    %35 = arith.addf %31, %34 : vector<8x16x16xf32>
    %36 = vector.extract_strided_slice %28 {offsets = [0, 2, 0], sizes = [8, 16, 16], strides = [1, 1, 1]} : vector<8x19x16xf32> to vector<8x16x16xf32>
    %cst_26 = arith.constant 3.750000e-01 : f32
    %37 = vector.broadcast %cst_26 : f32 to vector<8x16x16xf32>
    %38 = arith.mulf %37, %36 : vector<8x16x16xf32>
    %39 = arith.addf %35, %38 : vector<8x16x16xf32>
    %40 = vector.extract_strided_slice %28 {offsets = [0, 3, 0], sizes = [8, 16, 16], strides = [1, 1, 1]} : vector<8x19x16xf32> to vector<8x16x16xf32>
    %cst_27 = arith.constant 1.250000e-01 : f32
    %41 = vector.broadcast %cst_27 : f32 to vector<8x16x16xf32>
    %42 = arith.mulf %41, %40 : vector<8x16x16xf32>
    %43 = arith.addf %39, %42 : vector<8x16x16xf32>
    %44 = arith.index_cast %9 : i32 to index
    %c0_28 = arith.constant 0 : index
    %c0_29 = arith.constant 0 : index
    %45 = vector.load %arg2[%44, %c0_28, %c0_29] : memref<8x16x16xf32, #tpu.memory_space<vmem>>, vector<8x16x16xf32>
    tpu.vector_store %arg2[%44, %c0_28, %c0_29], %43 {strides = array<i32>} : memref<8x16x16xf32, #tpu.memory_space<vmem>>, vector<8x16x16xf32>,
    %c1_i32 = arith.constant 1 : i32
    return
  }
  func.func @transform_0(%arg0: i32) -> (i32, i32, i32) {
    %c0_i32 = arith.constant 0 : i32
    %c0_i32_0 = arith.constant 0 : i32
    %c0_i32_1 = arith.constant 0 : i32
    return %arg0, %c0_i32, %c0_i32_0 : i32, i32, i32
  }
  func.func @transform_1(%arg0: i32) -> (i32, i32, i32) {
    %c0_i32 = arith.constant 0 : i32
    %c0_i32_0 = arith.constant 0 : i32
    %c0_i32_1 = arith.constant 0 : i32
    return %arg0, %c0_i32, %c0_i32_0 : i32, i32, i32
  }
}

</mosaic_0001>

<llo_original>
// kernel: tpu_custom_call.1
$region0: #{tpu_custom_call.1}
  #allocation0 [shape = 'u32[]', space=smem, size = 0x4, offset = 0x4, fixed_abs, tag = 'smem constant byte address 0x4 - core index']
  #allocation1 [shape = 'u32[144,128]{1,0:T(1,128)}', space=vmem, size = 0x12000, scoped, tag = 'internal scratch']
  #allocation2 [shape = 'f32[8,19,19]{2,1,0:T(8,128)}', space=vmem, size = 0x18000, scoped, tag = 'scratch operand']
  %s0 = inlined_call_operand.hbm [shape: f32[8,16,16], index: 0, kind: input, shape index: {}]
  %s1 = inlined_call_operand.hbm [shape: f32[8,16,16], index: 1, kind: output, shape index: {}]
  %s2 = sld [smem:[#allocation0]]
  $region18: #{tpu_custom_call.1} parent=0
    _
  %s4 = ssub.s32 1, %s2
  %s5 = scalar_select 0, %s4, %s2
  $region1: #{tpu_custom_call.1} parent=0
    #allocation3 [shape = 'u8[65536]{0}', space=vmem, size = 0x10000, scoped, tag = 'input window, operand 0, single buffered']
    #allocation4 [shape = 's32[1]{0}', space=sflag, size = 0x4, scoped, tag = 'scoped memory for tpu_custom_call.1']
    #allocation5 [shape = 's32[1]{0}', space=sflag, size = 0x4, scoped, tag = 'scoped memory for tpu_custom_call.1']
    #allocation6 [shape = 'u8[65536]{0}', space=vmem, size = 0x10000, scoped, tag = 'output window, operand 0, single buffered']
    %6 = vsyncpa [#allocation4], 0
    %7 = vsyncpa [#allocation5], 0
    // Predicated region
    $region2: #{tpu_custom_call.1} parent=1 // pred_check
      _
    $region3: #{tpu_custom_call.1} parent=1 // pred_check_branch
      %9 = sbr.rel (0) target = $region5
    $region4: #{tpu_custom_call.1} parent=1 // pred_region
      %s11 = ssub.s32 2048, 2048
      %12 = vsyncadd [#allocation4], %s11
      %s13 = sshll.u32 [#allocation3], 4
      %s14 = int_to_ptr.vmem [resolvable:$true] %s13
      %19 = dma.hbm_to_vmem [thread:$0]  %s0, 2048, %s14, [#allocation4], 128, 128, 8
    $region5: #{tpu_custom_call.1} parent=1 // pred_fallthru
      _
    // Predicated region
    $region6: #{tpu_custom_call.1} parent=1 // pred_check
      _
    $region7: #{tpu_custom_call.1} parent=1 // pred_check_branch
      %21 = sbr.rel (0) target = $region9
    $region8: #{tpu_custom_call.1} parent=1 // pred_region
      %22 = dma.done [#allocation4], 2048
    $region9: #{tpu_custom_call.1} parent=1 // pred_fallthru
      _
    %vm23 = vcmask 148480
    %24 = vst.msk [vmem:[#allocation2] sm:$0x3] %vm23, 0.0
    %25 = vst.msk [vmem:[#allocation2 + $0x18] sm:$0x3] %vm23, 0.0
    %26 = vst.msk [vmem:[#allocation2 + $0x30] sm:$0x3] %vm23, 0.0
    %27 = vst.msk [vmem:[#allocation2 + $0x48] sm:$0x3] %vm23, 0.0
    %28 = vst.msk [vmem:[#allocation2 + $0x60] sm:$0x3] %vm23, 0.0
    %29 = vst.msk [vmem:[#allocation2 + $0x78] sm:$0x3] %vm23, 0.0
    %30 = vst.msk [vmem:[#allocation2 + $0x90] sm:$0x3] %vm23, 0.0
    %31 = vst.msk [vmem:[#allocation2 + $0xa8] sm:$0x3] %vm23, 0.0
    %vm32 = vcmask 15360
    %33 = vst.msk [vmem:[#allocation2] sm:$0xff] %vm32, 0.0
    %34 = vst.msk [vmem:[#allocation2 + $0x8] sm:$0xff] %vm32, 0.0
    %vm35 = vcmask 10240
    %36 = vst.msk [vmem:[#allocation2 + $0x10] sm:$0x7] %vm35, 0.0
    %37 = vst.msk [vmem:[#allocation2 + $0x18] sm:$0xff] %vm32, 0.0
    %38 = vst.msk [vmem:[#allocation2 + $0x20] sm:$0xff] %vm32, 0.0
    %39 = vst.msk [vmem:[#allocation2 + $0x28] sm:$0x7] %vm35, 0.0
    %40 = vst.msk [vmem:[#allocation2 + $0x30] sm:$0xff] %vm32, 0.0
    %41 = vst.msk [vmem:[#allocation2 + $0x38] sm:$0xff] %vm32, 0.0
    %42 = vst.msk [vmem:[#allocation2 + $0x40] sm:$0x7] %vm35, 0.0
    %43 = vst.msk [vmem:[#allocation2 + $0x48] sm:$0xff] %vm32, 0.0
    %44 = vst.msk [vmem:[#allocation2 + $0x50] sm:$0xff] %vm32, 0.0
    %45 = vst.msk [vmem:[#allocation2 + $0x58] sm:$0x7] %vm35, 0.0
    %46 = vst.msk [vmem:[#allocation2 + $0x60] sm:$0xff] %vm32, 0.0
    %47 = vst.msk [vmem:[#allocation2 + $0x68] sm:$0xff] %vm32, 0.0
    %48 = vst.msk [vmem:[#allocation2 + $0x70] sm:$0x7] %vm35, 0.0
    %49 = vst.msk [vmem:[#allocation2 + $0x78] sm:$0xff] %vm32, 0.0
    %50 = vst.msk [vmem:[#allocation2 + $0x80] sm:$0xff] %vm32, 0.0
    %51 = vst.msk [vmem:[#allocation2 + $0x88] sm:$0x7] %vm35, 0.0
    %52 = vst.msk [vmem:[#allocation2 + $0x90] sm:$0xff] %vm32, 0.0
    %53 = vst.msk [vmem:[#allocation2 + $0x98] sm:$0xff] %vm32, 0.0
    %54 = vst.msk [vmem:[#allocation2 + $0xa0] sm:$0x7] %vm35, 0.0
    %55 = vst.msk [vmem:[#allocation2 + $0xa8] sm:$0xff] %vm32, 0.0
    %56 = vst.msk [vmem:[#allocation2 + $0xb0] sm:$0xff] %vm32, 0.0
    %57 = vst.msk [vmem:[#allocation2 + $0xb8] sm:$0x7] %vm35, 0.0
    %vm58 = vcmask 147456
    %59 = vst.msk [vmem:[#allocation2 + $0x12] sm:$0x1] %vm58, 0.0
    %60 = vst.msk [vmem:[#allocation2 + $0x2a] sm:$0x1] %vm58, 0.0
    %61 = vst.msk [vmem:[#allocation2 + $0x42] sm:$0x1] %vm58, 0.0
    %62 = vst.msk [vmem:[#allocation2 + $0x5a] sm:$0x1] %vm58, 0.0
    %63 = vst.msk [vmem:[#allocation2 + $0x72] sm:$0x1] %vm58, 0.0
    %64 = vst.msk [vmem:[#allocation2 + $0x8a] sm:$0x1] %vm58, 0.0
    %65 = vst.msk [vmem:[#allocation2 + $0xa2] sm:$0x1] %vm58, 0.0
    %66 = vst.msk [vmem:[#allocation2 + $0xba] sm:$0x1] %vm58, 0.0
    %vm67 = vcmask 154768
    %68 = vst.msk [vmem:[#allocation2] sm:$0xff] %vm67, 0.0
    %69 = vst.msk [vmem:[#allocation2 + $0x8] sm:$0xff] %vm67, 0.0
    %vm70 = vcmask 149648
    %71 = vst.msk [vmem:[#allocation2 + $0x10] sm:$0x7] %vm70, 0.0
    %72 = vst.msk [vmem:[#allocation2 + $0x18] sm:$0xff] %vm67, 0.0
    %73 = vst.msk [vmem:[#allocation2 + $0x20] sm:$0xff] %vm67, 0.0
    %74 = vst.msk [vmem:[#allocation2 + $0x28] sm:$0x7] %vm70, 0.0
    %75 = vst.msk [vmem:[#allocation2 + $0x30] sm:$0xff] %vm67, 0.0
    %76 = vst.msk [vmem:[#allocation2 + $0x38] sm:$0xff] %vm67, 0.0
    %77 = vst.msk [vmem:[#allocation2 + $0x40] sm:$0x7] %vm70, 0.0
    %78 = vst.msk [vmem:[#allocation2 + $0x48] sm:$0xff] %vm67, 0.0
    %79 = vst.msk [vmem:[#allocation2 + $0x50] sm:$0xff] %vm67, 0.0
    %80 = vst.msk [vmem:[#allocation2 + $0x58] sm:$0x7] %vm70, 0.0
    %81 = vst.msk [vmem:[#allocation2 + $0x60] sm:$0xff] %vm67, 0.0
    %82 = vst.msk [vmem:[#allocation2 + $0x68] sm:$0xff] %vm67, 0.0
    %83 = vst.msk [vmem:[#allocation2 + $0x70] sm:$0x7] %vm70, 0.0
    %84 = vst.msk [vmem:[#allocation2 + $0x78] sm:$0xff] %vm67, 0.0
    %85 = vst.msk [vmem:[#allocation2 + $0x80] sm:$0xff] %vm67, 0.0
    %86 = vst.msk [vmem:[#allocation2 + $0x88] sm:$0x7] %vm70, 0.0
    %87 = vst.msk [vmem:[#allocation2 + $0x90] sm:$0xff] %vm67, 0.0
    %88 = vst.msk [vmem:[#allocation2 + $0x98] sm:$0xff] %vm67, 0.0
    %89 = vst.msk [vmem:[#allocation2 + $0xa0] sm:$0x7] %vm70, 0.0
    %90 = vst.msk [vmem:[#allocation2 + $0xa8] sm:$0xff] %vm67, 0.0
    %91 = vst.msk [vmem:[#allocation2 + $0xb0] sm:$0xff] %vm67, 0.0
    %92 = vst.msk [vmem:[#allocation2 + $0xb8] sm:$0x7] %vm70, 0.0
    %s93 = smul.u32 0, 16
    %s94 = scalar_lea.vmem [#allocation3], %s93
    %v95 = vld [vmem:[%s94] sm:$0xff]
    %v96 = vld [vmem:[%s94 + $0x8] sm:$0xff]
    %v97 = vld [vmem:[%s94 + $0x10] sm:$0xff]
    %v98 = vld [vmem:[%s94 + $0x18] sm:$0xff]
    %v99 = vld [vmem:[%s94 + $0x20] sm:$0xff]
    %v100 = vld [vmem:[%s94 + $0x28] sm:$0xff]
    %v101 = vld [vmem:[%s94 + $0x30] sm:$0xff]
    %v102 = vld [vmem:[%s94 + $0x38] sm:$0xff]
    %v103 = vld [vmem:[%s94 + $0x40] sm:$0xff]
    %v104 = vld [vmem:[%s94 + $0x48] sm:$0xff]
    %v105 = vld [vmem:[%s94 + $0x50] sm:$0xff]
    %v106 = vld [vmem:[%s94 + $0x58] sm:$0xff]
    %v107 = vld [vmem:[%s94 + $0x60] sm:$0xff]
    %v108 = vld [vmem:[%s94 + $0x68] sm:$0xff]
    %v109 = vld [vmem:[%s94 + $0x70] sm:$0xff]
    %v110 = vld [vmem:[%s94 + $0x78] sm:$0xff]
    %127 = vrot.lane.b32.xlu0 %v95, 2
    %v128 = vpop.permute.xlu0 %127
    %129 = vrot.lane.b32.xlu0 %v96, 2
    %v130 = vpop.permute.xlu0 %129
    %131 = vrot.lane.b32.xlu0 %v97, 2
    %v132 = vpop.permute.xlu0 %131
    %133 = vrot.lane.b32.xlu0 %v98, 2
    %v134 = vpop.permute.xlu0 %133
    %135 = vrot.lane.b32.xlu0 %v99, 2
    %v136 = vpop.permute.xlu0 %135
    %137 = vrot.lane.b32.xlu0 %v100, 2
    %v138 = vpop.permute.xlu0 %137
    %139 = vrot.lane.b32.xlu0 %v101, 2
    %v140 = vpop.permute.xlu0 %139
    %141 = vrot.lane.b32.xlu0 %v102, 2
    %v142 = vpop.permute.xlu0 %141
    %143 = vrot.lane.b32.xlu0 %v103, 2
    %v144 = vpop.permute.xlu0 %143
    %145 = vrot.lane.b32.xlu0 %v104, 2
    %v146 = vpop.permute.xlu0 %145
    %147 = vrot.lane.b32.xlu0 %v105, 2
    %v148 = vpop.permute.xlu0 %147
    %149 = vrot.lane.b32.xlu0 %v106, 2
    %v150 = vpop.permute.xlu0 %149
    %151 = vrot.lane.b32.xlu0 %v107, 2
    %v152 = vpop.permute.xlu0 %151
    %153 = vrot.lane.b32.xlu0 %v108, 2
    %v154 = vpop.permute.xlu0 %153
    %155 = vrot.lane.b32.xlu0 %v109, 2
    %v156 = vpop.permute.xlu0 %155
    %157 = vrot.lane.b32.xlu0 %v110, 2
    %v158 = vpop.permute.xlu0 %157
    %vm175 = vcmask 146448
    %176 = vst.msk [vmem:[#allocation2 + $0x2] sm:$0xff] %vm175, %v128
    %177 = vst.msk [vmem:[#allocation2 + $0xa] sm:$0xff] %vm175, %v130
    %178 = vst.msk [vmem:[#allocation2 + $0x1a] sm:$0xff] %vm175, %v132
    %179 = vst.msk [vmem:[#allocation2 + $0x22] sm:$0xff] %vm175, %v134
    %180 = vst.msk [vmem:[#allocation2 + $0x32] sm:$0xff] %vm175, %v136
    %181 = vst.msk [vmem:[#allocation2 + $0x3a] sm:$0xff] %vm175, %v138
    %182 = vst.msk [vmem:[#allocation2 + $0x4a] sm:$0xff] %vm175, %v140
    %183 = vst.msk [vmem:[#allocation2 + $0x52] sm:$0xff] %vm175, %v142
    %184 = vst.msk [vmem:[#allocation2 + $0x62] sm:$0xff] %vm175, %v144
    %185 = vst.msk [vmem:[#allocation2 + $0x6a] sm:$0xff] %vm175, %v146
    %186 = vst.msk [vmem:[#allocation2 + $0x7a] sm:$0xff] %vm175, %v148
    %187 = vst.msk [vmem:[#allocation2 + $0x82] sm:$0xff] %vm175, %v150
    %188 = vst.msk [vmem:[#allocation2 + $0x92] sm:$0xff] %vm175, %v152
    %189 = vst.msk [vmem:[#allocation2 + $0x9a] sm:$0xff] %vm175, %v154
    %190 = vst.msk [vmem:[#allocation2 + $0xaa] sm:$0xff] %vm175, %v156
    %191 = vst.msk [vmem:[#allocation2 + $0xb2] sm:$0xff] %vm175, %v158
    %v192 = vld [vmem:[#allocation2] sm:$0xff]
    %v193 = vld [vmem:[#allocation2 + $0x8] sm:$0xff]
    %v194 = vld [vmem:[#allocation2 + $0x10] sm:$0x7]
    %v195 = vld [vmem:[#allocation2 + $0x18] sm:$0xff]
    %v196 = vld [vmem:[#allocation2 + $0x20] sm:$0xff]
    %v197 = vld [vmem:[#allocation2 + $0x28] sm:$0x7]
    %v198 = vld [vmem:[#allocation2 + $0x30] sm:$0xff]
    %v199 = vld [vmem:[#allocation2 + $0x38] sm:$0xff]
    %v200 = vld [vmem:[#allocation2 + $0x40] sm:$0x7]
    %v201 = vld [vmem:[#allocation2 + $0x48] sm:$0xff]
    %v202 = vld [vmem:[#allocation2 + $0x50] sm:$0xff]
    %v203 = vld [vmem:[#allocation2 + $0x58] sm:$0x7]
    %v204 = vld [vmem:[#allocation2 + $0x60] sm:$0xff]
    %v205 = vld [vmem:[#allocation2 + $0x68] sm:$0xff]
    %v206 = vld [vmem:[#allocation2 + $0x70] sm:$0x7]
    %v207 = vld [vmem:[#allocation2 + $0x78] sm:$0xff]
    %v208 = vld [vmem:[#allocation2 + $0x80] sm:$0xff]
    %v209 = vld [vmem:[#allocation2 + $0x88] sm:$0x7]
    %v210 = vld [vmem:[#allocation2 + $0x90] sm:$0xff]
    %v211 = vld [vmem:[#allocation2 + $0x98] sm:$0xff]
    %v212 = vld [vmem:[#allocation2 + $0xa0] sm:$0x7]
    %v213 = vld [vmem:[#allocation2 + $0xa8] sm:$0xff]
    %v214 = vld [vmem:[#allocation2 + $0xb0] sm:$0xff]
    %v215 = vld [vmem:[#allocation2 + $0xb8] sm:$0x7]
    %v216 = vmul.f32 %v192, 0.125
    %v217 = vmul.f32 %v193, 0.125
    %v218 = vmul.f32 %v194, 0.125
    %v219 = vmul.f32 %v195, 0.125
    %v220 = vmul.f32 %v196, 0.125
    %v221 = vmul.f32 %v197, 0.125
    %v222 = vmul.f32 %v198, 0.125
    %v223 = vmul.f32 %v199, 0.125
    %v224 = vmul.f32 %v200, 0.125
    %v225 = vmul.f32 %v201, 0.125
    %v226 = vmul.f32 %v202, 0.125
    %v227 = vmul.f32 %v203, 0.125
    %v228 = vmul.f32 %v204, 0.125
    %v229 = vmul.f32 %v205, 0.125
    %v230 = vmul.f32 %v206, 0.125
    %v231 = vmul.f32 %v207, 0.125
    %v232 = vmul.f32 %v208, 0.125
    %v233 = vmul.f32 %v209, 0.125
    %v234 = vmul.f32 %v210, 0.125
    %v235 = vmul.f32 %v211, 0.125
    %v236 = vmul.f32 %v212, 0.125
    %v237 = vmul.f32 %v213, 0.125
    %v238 = vmul.f32 %v214, 0.125
    %v239 = vmul.f32 %v215, 0.125
    %v240 = vmul.f32 %v192, 0.375
    %v241 = vmul.f32 %v193, 0.375
    %v242 = vmul.f32 %v194, 0.375
    %v243 = vmul.f32 %v195, 0.375
    %v244 = vmul.f32 %v196, 0.375
    %v245 = vmul.f32 %v197, 0.375
    %v246 = vmul.f32 %v198, 0.375
    %v247 = vmul.f32 %v199, 0.375
    %v248 = vmul.f32 %v200, 0.375
    %v249 = vmul.f32 %v201, 0.375
    %v250 = vmul.f32 %v202, 0.375
    %v251 = vmul.f32 %v203, 0.375
    %v252 = vmul.f32 %v204, 0.375
    %v253 = vmul.f32 %v205, 0.375
    %v254 = vmul.f32 %v206, 0.375
    %v255 = vmul.f32 %v207, 0.375
    %v256 = vmul.f32 %v208, 0.375
    %v257 = vmul.f32 %v209, 0.375
    %v258 = vmul.f32 %v210, 0.375
    %v259 = vmul.f32 %v211, 0.375
    %v260 = vmul.f32 %v212, 0.375
    %v261 = vmul.f32 %v213, 0.375
    %v262 = vmul.f32 %v214, 0.375
    %v263 = vmul.f32 %v215, 0.375
    %288 = vrot.lane.b32.xlu0 %v240, 127
    %v289 = vpop.permute.xlu0 %288
    %290 = vrot.lane.b32.xlu0 %v241, 127
    %v291 = vpop.permute.xlu0 %290
    %292 = vrot.lane.b32.xlu0 %v242, 127
    %v293 = vpop.permute.xlu0 %292
    %294 = vrot.lane.b32.xlu0 %v243, 127
    %v295 = vpop.permute.xlu0 %294
    %296 = vrot.lane.b32.xlu0 %v244, 127
    %v297 = vpop.permute.xlu0 %296
    %298 = vrot.lane.b32.xlu0 %v245, 127
    %v299 = vpop.permute.xlu0 %298
    %300 = vrot.lane.b32.xlu0 %v246, 127
    %v301 = vpop.permute.xlu0 %300
    %302 = vrot.lane.b32.xlu0 %v247, 127
    %v303 = vpop.permute.xlu0 %302
    %304 = vrot.lane.b32.xlu0 %v248, 127
    %v305 = vpop.permute.xlu0 %304
    %306 = vrot.lane.b32.xlu0 %v249, 127
    %v307 = vpop.permute.xlu0 %306
    %308 = vrot.lane.b32.xlu0 %v250, 127
    %v309 = vpop.permute.xlu0 %308
    %310 = vrot.lane.b32.xlu0 %v251, 127
    %v311 = vpop.permute.xlu0 %310
    %312 = vrot.lane.b32.xlu0 %v252, 127
    %v313 = vpop.permute.xlu0 %312
    %314 = vrot.lane.b32.xlu0 %v253, 127
    %v315 = vpop.permute.xlu0 %314
    %316 = vrot.lane.b32.xlu0 %v254, 127
    %v317 = vpop.permute.xlu0 %316
    %318 = vrot.lane.b32.xlu0 %v255, 127
    %v319 = vpop.permute.xlu0 %318
    %320 = vrot.lane.b32.xlu0 %v256, 127
    %v321 = vpop.permute.xlu0 %320
    %322 = vrot.lane.b32.xlu0 %v257, 127
    %v323 = vpop.permute.xlu0 %322
    %324 = vrot.lane.b32.xlu0 %v258, 127
    %v325 = vpop.permute.xlu0 %324
    %326 = vrot.lane.b32.xlu0 %v259, 127
    %v327 = vpop.permute.xlu0 %326
    %328 = vrot.lane.b32.xlu0 %v260, 127
    %v329 = vpop.permute.xlu0 %328
    %330 = vrot.lane.b32.xlu0 %v261, 127
    %v331 = vpop.permute.xlu0 %330
    %332 = vrot.lane.b32.xlu0 %v262, 127
    %v333 = vpop.permute.xlu0 %332
    %334 = vrot.lane.b32.xlu0 %v263, 127
    %v335 = vpop.permute.xlu0 %334
    %v360 = vadd.f32 %v216, %v289
    %v361 = vadd.f32 %v217, %v291
    %v362 = vadd.f32 %v218, %v293
    %v363 = vadd.f32 %v219, %v295
    %v364 = vadd.f32 %v220, %v297
    %v365 = vadd.f32 %v221, %v299
    %v366 = vadd.f32 %v222, %v301
    %v367 = vadd.f32 %v223, %v303
    %v368 = vadd.f32 %v224, %v305
    %v369 = vadd.f32 %v225, %v307
    %v370 = vadd.f32 %v226, %v309
    %v371 = vadd.f32 %v227, %v311
    %v372 = vadd.f32 %v228, %v313
    %v373 = vadd.f32 %v229, %v315
    %v374 = vadd.f32 %v230, %v317
    %v375 = vadd.f32 %v231, %v319
    %v376 = vadd.f32 %v232, %v321
    %v377 = vadd.f32 %v233, %v323
    %v378 = vadd.f32 %v234, %v325
    %v379 = vadd.f32 %v235, %v327
    %v380 = vadd.f32 %v236, %v329
    %v381 = vadd.f32 %v237, %v331
    %v382 = vadd.f32 %v238, %v333
    %v383 = vadd.f32 %v239, %v335
    %384 = vrot.lane.b32.xlu0 %v240, 126
    %v385 = vpop.permute.xlu0 %384
    %386 = vrot.lane.b32.xlu0 %v241, 126
    %v387 = vpop.permute.xlu0 %386
    %388 = vrot.lane.b32.xlu0 %v242, 126
    %v389 = vpop.permute.xlu0 %388
    %390 = vrot.lane.b32.xlu0 %v243, 126
    %v391 = vpop.permute.xlu0 %390
    %392 = vrot.lane.b32.xlu0 %v244, 126
    %v393 = vpop.permute.xlu0 %392
    %394 = vrot.lane.b32.xlu0 %v245, 126
    %v395 = vpop.permute.xlu0 %394
    %396 = vrot.lane.b32.xlu0 %v246, 126
    %v397 = vpop.permute.xlu0 %396
    %398 = vrot.lane.b32.xlu0 %v247, 126
    %v399 = vpop.permute.xlu0 %398
    %400 = vrot.lane.b32.xlu0 %v248, 126
    %v401 = vpop.permute.xlu0 %400
    %402 = vrot.lane.b32.xlu0 %v249, 126
    %v403 = vpop.permute.xlu0 %402
    %404 = vrot.lane.b32.xlu0 %v250, 126
    %v405 = vpop.permute.xlu0 %404
    %406 = vrot.lane.b32.xlu0 %v251, 126
    %v407 = vpop.permute.xlu0 %406
    %408 = vrot.lane.b32.xlu0 %v252, 126
    %v409 = vpop.permute.xlu0 %408
    %410 = vrot.lane.b32.xlu0 %v253, 126
    %v411 = vpop.permute.xlu0 %410
    %412 = vrot.lane.b32.xlu0 %v254, 126
    %v413 = vpop.permute.xlu0 %412
    %414 = vrot.lane.b32.xlu0 %v255, 126
    %v415 = vpop.permute.xlu0 %414
    %416 = vrot.lane.b32.xlu0 %v256, 126
    %v417 = vpop.permute.xlu0 %416
    %418 = vrot.lane.b32.xlu0 %v257, 126
    %v419 = vpop.permute.xlu0 %418
    %420 = vrot.lane.b32.xlu0 %v258, 126
    %v421 = vpop.permute.xlu0 %420
    %422 = vrot.lane.b32.xlu0 %v259, 126
    %v423 = vpop.permute.xlu0 %422
    %424 = vrot.lane.b32.xlu0 %v260, 126
    %v425 = vpop.permute.xlu0 %424
    %426 = vrot.lane.b32.xlu0 %v261, 126
    %v427 = vpop.permute.xlu0 %426
    %428 = vrot.lane.b32.xlu0 %v262, 126
    %v429 = vpop.permute.xlu0 %428
    %430 = vrot.lane.b32.xlu0 %v263, 126
    %v431 = vpop.permute.xlu0 %430
    %v456 = vadd.f32 %v360, %v385
    %v457 = vadd.f32 %v361, %v387
    %v458 = vadd.f32 %v362, %v389
    %v459 = vadd.f32 %v363, %v391
    %v460 = vadd.f32 %v364, %v393
    %v461 = vadd.f32 %v365, %v395
    %v462 = vadd.f32 %v366, %v397
    %v463 = vadd.f32 %v367, %v399
    %v464 = vadd.f32 %v368, %v401
    %v465 = vadd.f32 %v369, %v403
    %v466 = vadd.f32 %v370, %v405
    %v467 = vadd.f32 %v371, %v407
    %v468 = vadd.f32 %v372, %v409
    %v469 = vadd.f32 %v373, %v411
    %v470 = vadd.f32 %v374, %v413
    %v471 = vadd.f32 %v375, %v415
    %v472 = vadd.f32 %v376, %v417
    %v473 = vadd.f32 %v377, %v419
    %v474 = vadd.f32 %v378, %v421
    %v475 = vadd.f32 %v379, %v423
    %v476 = vadd.f32 %v380, %v425
    %v477 = vadd.f32 %v381, %v427
    %v478 = vadd.f32 %v382, %v429
    %v479 = vadd.f32 %v383, %v431
    %504 = vrot.lane.b32.xlu0 %v216, 125
    %v505 = vpop.permute.xlu0 %504
    %506 = vrot.lane.b32.xlu0 %v217, 125
    %v507 = vpop.permute.xlu0 %506
    %508 = vrot.lane.b32.xlu0 %v218, 125
    %v509 = vpop.permute.xlu0 %508
    %510 = vrot.lane.b32.xlu0 %v219, 125
    %v511 = vpop.permute.xlu0 %510
    %512 = vrot.lane.b32.xlu0 %v220, 125
    %v513 = vpop.permute.xlu0 %512
    %514 = vrot.lane.b32.xlu0 %v221, 125
    %v515 = vpop.permute.xlu0 %514
    %516 = vrot.lane.b32.xlu0 %v222, 125
    %v517 = vpop.permute.xlu0 %516
    %518 = vrot.lane.b32.xlu0 %v223, 125
    %v519 = vpop.permute.xlu0 %518
    %520 = vrot.lane.b32.xlu0 %v224, 125
    %v521 = vpop.permute.xlu0 %520
    %522 = vrot.lane.b32.xlu0 %v225, 125
    %v523 = vpop.permute.xlu0 %522
    %524 = vrot.lane.b32.xlu0 %v226, 125
    %v525 = vpop.permute.xlu0 %524
    %526 = vrot.lane.b32.xlu0 %v227, 125
    %v527 = vpop.permute.xlu0 %526
    %528 = vrot.lane.b32.xlu0 %v228, 125
    %v529 = vpop.permute.xlu0 %528
    %530 = vrot.lane.b32.xlu0 %v229, 125
    %v531 = vpop.permute.xlu0 %530
    %532 = vrot.lane.b32.xlu0 %v230, 125
    %v533 = vpop.permute.xlu0 %532
    %534 = vrot.lane.b32.xlu0 %v231, 125
    %v535 = vpop.permute.xlu0 %534
    %536 = vrot.lane.b32.xlu0 %v232, 125
    %v537 = vpop.permute.xlu0 %536
    %538 = vrot.lane.b32.xlu0 %v233, 125
    %v539 = vpop.permute.xlu0 %538
    %540 = vrot.lane.b32.xlu0 %v234, 125
    %v541 = vpop.permute.xlu0 %540
    %542 = vrot.lane.b32.xlu0 %v235, 125
    %v543 = vpop.permute.xlu0 %542
    %544 = vrot.lane.b32.xlu0 %v236, 125
    %v545 = vpop.permute.xlu0 %544
    %546 = vrot.lane.b32.xlu0 %v237, 125
    %v547 = vpop.permute.xlu0 %546
    %548 = vrot.lane.b32.xlu0 %v238, 125
    %v549 = vpop.permute.xlu0 %548
    %550 = vrot.lane.b32.xlu0 %v239, 125
    %v551 = vpop.permute.xlu0 %550
    %v576 = vadd.f32 %v456, %v505
    %v577 = vadd.f32 %v457, %v507
    %v578 = vadd.f32 %v458, %v509
    %v579 = vadd.f32 %v459, %v511
    %v580 = vadd.f32 %v460, %v513
    %v581 = vadd.f32 %v461, %v515
    %v582 = vadd.f32 %v462, %v517
    %v583 = vadd.f32 %v463, %v519
    %v584 = vadd.f32 %v464, %v521
    %v585 = vadd.f32 %v465, %v523
    %v586 = vadd.f32 %v466, %v525
    %v587 = vadd.f32 %v467, %v527
    %v588 = vadd.f32 %v468, %v529
    %v589 = vadd.f32 %v469, %v531
    %v590 = vadd.f32 %v470, %v533
    %v591 = vadd.f32 %v471, %v535
    %v592 = vadd.f32 %v472, %v537
    %v593 = vadd.f32 %v473, %v539
    %v594 = vadd.f32 %v474, %v541
    %v595 = vadd.f32 %v475, %v543
    %v596 = vadd.f32 %v476, %v545
    %v597 = vadd.f32 %v477, %v547
    %v598 = vadd.f32 %v478, %v549
    %v599 = vadd.f32 %v479, %v551
    %v600 = vmul.f32 %v576, 0.125
    %v601 = vmul.f32 %v577, 0.125
    %v602 = vmul.f32 %v579, 0.125
    %v603 = vmul.f32 %v580, 0.125
    %v604 = vmul.f32 %v582, 0.125
    %v605 = vmul.f32 %v583, 0.125
    %v606 = vmul.f32 %v585, 0.125
    %v607 = vmul.f32 %v586, 0.125
    %v608 = vmul.f32 %v588, 0.125
    %v609 = vmul.f32 %v589, 0.125
    %v610 = vmul.f32 %v591, 0.125
    %v611 = vmul.f32 %v592, 0.125
    %v612 = vmul.f32 %v594, 0.125
    %v613 = vmul.f32 %v595, 0.125
    %v614 = vmul.f32 %v597, 0.125
    %v615 = vmul.f32 %v598, 0.125
    %v616 = vmul.f32 %v576, 0.375
    %v617 = vmul.f32 %v577, 0.375
    %v618 = vmul.f32 %v578, 0.375
    %v619 = vmul.f32 %v579, 0.375
    %v620 = vmul.f32 %v580, 0.375
    %v621 = vmul.f32 %v581, 0.375
    %v622 = vmul.f32 %v582, 0.375
    %v623 = vmul.f32 %v583, 0.375
    %v624 = vmul.f32 %v584, 0.375
    %v625 = vmul.f32 %v585, 0.375
    %v626 = vmul.f32 %v586, 0.375
    %v627 = vmul.f32 %v587, 0.375
    %v628 = vmul.f32 %v588, 0.375
    %v629 = vmul.f32 %v589, 0.375
    %v630 = vmul.f32 %v590, 0.375
    %v631 = vmul.f32 %v591, 0.375
    %v632 = vmul.f32 %v592, 0.375
    %v633 = vmul.f32 %v593, 0.375
    %v634 = vmul.f32 %v594, 0.375
    %v635 = vmul.f32 %v595, 0.375
    %v636 = vmul.f32 %v596, 0.375
    %v637 = vmul.f32 %v597, 0.375
    %v638 = vmul.f32 %v598, 0.375
    %v639 = vmul.f32 %v599, 0.375
    %vm664 = vcmask 1046528
    %v665 = vrot.slane %v616, 1
    %v666 = vrot.slane %v617, 1
    %v667 = vsel %vm664, %v665, %v666
    %v668 = vrot.slane %v618, 1
    %v669 = vsel %vm664, %v666, %v668
    %v670 = vrot.slane %v619, 1
    %v671 = vrot.slane %v620, 1
    %v672 = vsel %vm664, %v670, %v671
    %v673 = vrot.slane %v621, 1
    %v674 = vsel %vm664, %v671, %v673
    %v675 = vrot.slane %v622, 1
    %v676 = vrot.slane %v623, 1
    %v677 = vsel %vm664, %v675, %v676
    %v678 = vrot.slane %v624, 1
    %v679 = vsel %vm664, %v676, %v678
    %v680 = vrot.slane %v625, 1
    %v681 = vrot.slane %v626, 1
    %v682 = vsel %vm664, %v680, %v681
    %v683 = vrot.slane %v627, 1
    %v684 = vsel %vm664, %v681, %v683
    %v685 = vrot.slane %v628, 1
    %v686 = vrot.slane %v629, 1
    %v687 = vsel %vm664, %v685, %v686
    %v688 = vrot.slane %v630, 1
    %v689 = vsel %vm664, %v686, %v688
    %v690 = vrot.slane %v631, 1
    %v691 = vrot.slane %v632, 1
    %v692 = vsel %vm664, %v690, %v691
    %v693 = vrot.slane %v633, 1
    %v694 = vsel %vm664, %v691, %v693
    %v695 = vrot.slane %v634, 1
    %v696 = vrot.slane %v635, 1
    %v697 = vsel %vm664, %v695, %v696
    %v698 = vrot.slane %v636, 1
    %v699 = vsel %vm664, %v696, %v698
    %v700 = vrot.slane %v637, 1
    %v701 = vrot.slane %v638, 1
    %v702 = vsel %vm664, %v700, %v701
    %v703 = vrot.slane %v639, 1
    %v704 = vsel %vm664, %v701, %v703
    %v721 = vadd.f32 %v600, %v667
    %v722 = vadd.f32 %v601, %v669
    %v723 = vadd.f32 %v602, %v672
    %v724 = vadd.f32 %v603, %v674
    %v725 = vadd.f32 %v604, %v677
    %v726 = vadd.f32 %v605, %v679
    %v727 = vadd.f32 %v606, %v682
    %v728 = vadd.f32 %v607, %v684
    %v729 = vadd.f32 %v608, %v687
    %v730 = vadd.f32 %v609, %v689
    %v731 = vadd.f32 %v610, %v692
    %v732 = vadd.f32 %v611, %v694
    %v733 = vadd.f32 %v612, %v697
    %v734 = vadd.f32 %v613, %v699
    %v735 = vadd.f32 %v614, %v702
    %v736 = vadd.f32 %v615, %v704
    %vm737 = vcmask 1045504
    %v738 = vrot.slane %v616, 2
    %v739 = vrot.slane %v617, 2
    %v740 = vsel %vm737, %v738, %v739
    %v741 = vrot.slane %v618, 2
    %v742 = vsel %vm737, %v739, %v741
    %v743 = vrot.slane %v619, 2
    %v744 = vrot.slane %v620, 2
    %v745 = vsel %vm737, %v743, %v744
    %v746 = vrot.slane %v621, 2
    %v747 = vsel %vm737, %v744, %v746
    %v748 = vrot.slane %v622, 2
    %v749 = vrot.slane %v623, 2
    %v750 = vsel %vm737, %v748, %v749
    %v751 = vrot.slane %v624, 2
    %v752 = vsel %vm737, %v749, %v751
    %v753 = vrot.slane %v625, 2
    %v754 = vrot.slane %v626, 2
    %v755 = vsel %vm737, %v753, %v754
    %v756 = vrot.slane %v627, 2
    %v757 = vsel %vm737, %v754, %v756
    %v758 = vrot.slane %v628, 2
    %v759 = vrot.slane %v629, 2
    %v760 = vsel %vm737, %v758, %v759
    %v761 = vrot.slane %v630, 2
    %v762 = vsel %vm737, %v759, %v761
    %v763 = vrot.slane %v631, 2
    %v764 = vrot.slane %v632, 2
    %v765 = vsel %vm737, %v763, %v764
    %v766 = vrot.slane %v633, 2
    %v767 = vsel %vm737, %v764, %v766
    %v768 = vrot.slane %v634, 2
    %v769 = vrot.slane %v635, 2
    %v770 = vsel %vm737, %v768, %v769
    %v771 = vrot.slane %v636, 2
    %v772 = vsel %vm737, %v769, %v771
    %v773 = vrot.slane %v637, 2
    %v774 = vrot.slane %v638, 2
    %v775 = vsel %vm737, %v773, %v774
    %v776 = vrot.slane %v639, 2
    %v777 = vsel %vm737, %v774, %v776
    %v794 = vadd.f32 %v721, %v740
    %v795 = vadd.f32 %v722, %v742
    %v796 = vadd.f32 %v723, %v745
    %v797 = vadd.f32 %v724, %v747
    %v798 = vadd.f32 %v725, %v750
    %v799 = vadd.f32 %v726, %v752
    %v800 = vadd.f32 %v727, %v755
    %v801 = vadd.f32 %v728, %v757
    %v802 = vadd.f32 %v729, %v760
    %v803 = vadd.f32 %v730, %v762
    %v804 = vadd.f32 %v731, %v765
    %v805 = vadd.f32 %v732, %v767
    %v806 = vadd.f32 %v733, %v770
    %v807 = vadd.f32 %v734, %v772
    %v808 = vadd.f32 %v735, %v775
    %v809 = vadd.f32 %v736, %v777
    %v810 = vmul.f32 %v578, 0.125
    %v811 = vmul.f32 %v581, 0.125
    %v812 = vmul.f32 %v584, 0.125
    %v813 = vmul.f32 %v587, 0.125
    %v814 = vmul.f32 %v590, 0.125
    %v815 = vmul.f32 %v593, 0.125
    %v816 = vmul.f32 %v596, 0.125
    %v817 = vmul.f32 %v599, 0.125
    %vm842 = vcmask 1044480
    %v843 = vrot.slane %v600, 3
    %v844 = vrot.slane %v601, 3
    %v845 = vsel %vm842, %v843, %v844
    %v846 = vrot.slane %v810, 3
    %v847 = vsel %vm842, %v844, %v846
    %v848 = vrot.slane %v602, 3
    %v849 = vrot.slane %v603, 3
    %v850 = vsel %vm842, %v848, %v849
    %v851 = vrot.slane %v811, 3
    %v852 = vsel %vm842, %v849, %v851
    %v853 = vrot.slane %v604, 3
    %v854 = vrot.slane %v605, 3
    %v855 = vsel %vm842, %v853, %v854
    %v856 = vrot.slane %v812, 3
    %v857 = vsel %vm842, %v854, %v856
    %v858 = vrot.slane %v606, 3
    %v859 = vrot.slane %v607, 3
    %v860 = vsel %vm842, %v858, %v859
    %v861 = vrot.slane %v813, 3
    %v862 = vsel %vm842, %v859, %v861
    %v863 = vrot.slane %v608, 3
    %v864 = vrot.slane %v609, 3
    %v865 = vsel %vm842, %v863, %v864
    %v866 = vrot.slane %v814, 3
    %v867 = vsel %vm842, %v864, %v866
    %v868 = vrot.slane %v610, 3
    %v869 = vrot.slane %v611, 3
    %v870 = vsel %vm842, %v868, %v869
    %v871 = vrot.slane %v815, 3
    %v872 = vsel %vm842, %v869, %v871
    %v873 = vrot.slane %v612, 3
    %v874 = vrot.slane %v613, 3
    %v875 = vsel %vm842, %v873, %v874
    %v876 = vrot.slane %v816, 3
    %v877 = vsel %vm842, %v874, %v876
    %v878 = vrot.slane %v614, 3
    %v879 = vrot.slane %v615, 3
    %v880 = vsel %vm842, %v878, %v879
    %v881 = vrot.slane %v817, 3
    %v882 = vsel %vm842, %v879, %v881
    %v899 = vadd.f32 %v794, %v845
    %v900 = vadd.f32 %v795, %v847
    %v901 = vadd.f32 %v796, %v850
    %v902 = vadd.f32 %v797, %v852
    %v903 = vadd.f32 %v798, %v855
    %v904 = vadd.f32 %v799, %v857
    %v905 = vadd.f32 %v800, %v860
    %v906 = vadd.f32 %v801, %v862
    %v907 = vadd.f32 %v802, %v865
    %v908 = vadd.f32 %v803, %v867
    %v909 = vadd.f32 %v804, %v870
    %v910 = vadd.f32 %v805, %v872
    %v911 = vadd.f32 %v806, %v875
    %v912 = vadd.f32 %v807, %v877
    %v913 = vadd.f32 %v808, %v880
    %v914 = vadd.f32 %v809, %v882
    %s915 = scalar_lea.vmem [#allocation6], %s93
    %vm916 = vcmask 130048
    %917 = vst.msk [vmem:[%s915] sm:$0xff] %vm916, %v899
    %918 = vst.msk [vmem:[%s915 + $0x8] sm:$0xff] %vm916, %v900
    %919 = vst.msk [vmem:[%s915 + $0x10] sm:$0xff] %vm916, %v901
    %920 = vst.msk [vmem:[%s915 + $0x18] sm:$0xff] %vm916, %v902
    %921 = vst.msk [vmem:[%s915 + $0x20] sm:$0xff] %vm916, %v903
    %922 = vst.msk [vmem:[%s915 + $0x28] sm:$0xff] %vm916, %v904
    %923 = vst.msk [vmem:[%s915 + $0x30] sm:$0xff] %vm916, %v905
    %924 = vst.msk [vmem:[%s915 + $0x38] sm:$0xff] %vm916, %v906
    %925 = vst.msk [vmem:[%s915 + $0x40] sm:$0xff] %vm916, %v907
    %926 = vst.msk [vmem:[%s915 + $0x48] sm:$0xff] %vm916, %v908
    %927 = vst.msk [vmem:[%s915 + $0x50] sm:$0xff] %vm916, %v909
    %928 = vst.msk [vmem:[%s915 + $0x58] sm:$0xff] %vm916, %v910
    %929 = vst.msk [vmem:[%s915 + $0x60] sm:$0xff] %vm916, %v911
    %930 = vst.msk [vmem:[%s915 + $0x68] sm:$0xff] %vm916, %v912
    %931 = vst.msk [vmem:[%s915 + $0x70] sm:$0xff] %vm916, %v913
    %932 = vst.msk [vmem:[%s915 + $0x78] sm:$0xff] %vm916, %v914
    // Predicated region
    $region10: #{tpu_custom_call.1} parent=1 // pred_check
      _
    $region11: #{tpu_custom_call.1} parent=1 // pred_check_branch
      %934 = sbr.rel (0) target = $region13
    $region12: #{tpu_custom_call.1} parent=1 // pred_region
      %s936 = ssub.s32 2048, 2048
      %937 = vsyncadd [#allocation5], %s936
      %s938 = sshll.u32 [#allocation6], 4
      %s939 = int_to_ptr.vmem [resolvable:$true] %s938
      %944 = dma.vmem_to_hbm [thread:$0]  %s939, 2048, %s1, [#allocation5], 128, 128, 8
    $region13: #{tpu_custom_call.1} parent=1 // pred_fallthru
      _
    // Predicated region
    $region14: #{tpu_custom_call.1} parent=1 // pred_check
      _
    $region15: #{tpu_custom_call.1} parent=1 // pred_check_branch
      %946 = sbr.rel (0) target = $region17
    $region16: #{tpu_custom_call.1} parent=1 // pred_region
      %947 = dma.done [#allocation5], 2048
    $region17: #{tpu_custom_call.1} parent=1 // pred_fallthru
      _
    %948 = vsyncpa [#allocation4], 1
    %949 = vsyncpa [#allocation5], 1

</llo_original>
